<compile_context>
chip_gen: v5e
topology: v5e:2x2
jax: 0.10.0
libtpu: 0.0.40
codegen_flags: <defaults>
</compile_context>

<pallas_src>
import math

import jax
import jax.numpy as jnp
import numpy as np
from jax.experimental import pallas as pl
from jax.experimental.pallas import tpu as pltpu

_TWO_PI = 2.0 * math.pi
_PI = math.pi
_INV_TWO_PI = 1.0 / _TWO_PI

# Deterministic stand-in for dataset.rescale(FdFoRefAngle.NAME, x): affine map from the
# normalized network output to radians.
# TODO(synk): real scale/shift come from the sloop dataset normalization stats.
ANGLE_RESCALE_SCALE = _TWO_PI
ANGLE_RESCALE_SHIFT = 0.0

# |pa - la| = |SCALE| * |p_raw - l_raw|  (the SHIFT cancels), so rescale + clamp_angle
# + /pi folds to:  u = |p - l| * |SCALE|/(2pi);  frac = u - floor(u);
# angle_term = 2 * min(frac, 1 - frac).
_ANGLE_FRAC_SCALE = abs(ANGLE_RESCALE_SCALE) * _INV_TWO_PI

_LANES = 128


def _round_up(x, m):
    return ((x + m - 1) // m) * m


def _default_num_core_splits():
    # v7x has 2 TensorCores per chip; v5e/v6e have 1 (v4/v5p megacore is handled by the
    # "parallel" dimension semantics automatically, so 1 is fine there too).
    try:
        kind = jax.devices()[0].device_kind.lower()
    except Exception:
        return 1
    return 2 if "7" in kind else 1


def _foref_loss_kernel(both_ref, out_ref, acc_ref):
    # both_ref: (6, sub_t, 128) tile. Rows 0..2 = prediction (x, y, angle), rows 3..5 =
    # label (x, y, angle); the batch lives on the (sublane, lane) axes -> lane-dense VPU.
    step = pl.program_id(1)

    @pl.when(step == 0)
    def _init():
        acc_ref[...] = jnp.zeros_like(acc_ref)

    # Native-dtype loads, in-register upcast (halves HBM traffic for bf16 inputs).
    px = both_ref[0].astype(jnp.float32)
    py = both_ref[1].astype(jnp.float32)
    pa = both_ref[2].astype(jnp.float32)
    lx = both_ref[3].astype(jnp.float32)
    ly = both_ref[4].astype(jnp.float32)
    la = both_ref[5].astype(jnp.float32)

    dx = px - lx
    dy = py - ly

    # rescale + clamp_angle_tensor + /pi, algebraically folded (see _ANGLE_FRAC_SCALE).
    u = jnp.abs(pa - la) * _ANGLE_FRAC_SCALE
    frac = u - jnp.floor(u)                        # (|pa - la| mod 2pi) / 2pi
    ang = 2.0 * jnp.minimum(frac, 1.0 - frac)      # reflect into [0, pi], then / pi

    # Per-lane partial sums only (pure VPU); the cross-lane reduce is paid once at the end.
    acc_ref[...] += dx * dx + dy * dy + ang * ang

    @pl.when(step == pl.num_programs(1) - 1)
    def _finalize():
        acc = acc_ref[...]                                              # (sub_t, 128)
        folded = acc.reshape(acc.shape[0] // 8, 8, _LANES).sum(axis=0)  # vreg adds
        out_ref[...] = jnp.sum(folded, keepdims=True)                   # (1, 1) XLU reduce


def foref_loss(prediction, label, *, block_sublanes=1024, num_core_splits=None):
    """prediction, label: (B, 3) arrays -> scalar loss (float32)."""
    B, F = prediction.shape
    assert F == 3 and label.shape == (B, 3)

    if num_core_splits is None:
        num_core_splits = _default_num_core_splits()

    dtype = jnp.promote_types(prediction.dtype, label.dtype)
    itemsize = jnp.dtype(dtype).itemsize
    sub_align = 8 if itemsize >= 4 else (16 if itemsize == 2 else 32)

    rows = _round_up(B, _LANES) // _LANES                  # number of 128-lane rows

    # Tile size: as large as requested, but no larger than the per-split work (minimal
    # padding for small/mid B) and hard-capped so double-buffered tiles stay well inside
    # v7x's 64 MiB per-TC VMEM.
    cap = _round_up(min(block_sublanes, 4096), sub_align)
    target = _round_up(-(-rows // num_core_splits), sub_align)
    sub_t = min(cap, target)

    rows_padded = _round_up(rows, sub_t * num_core_splits)
    tiles_per_split = rows_padded // (sub_t * num_core_splits)
    b_padded = rows_padded * _LANES

    # Lane-dense prep: single fused transpose+pad+reshape producing one (6, rows, 128)
    # slab (one DMA stream per grid step). Padded entries contribute exactly zero.
    # TODO(synk): producers that can emit the (6, B) layout directly should do so — this
    # prep pass re-reads both inputs and is the main remaining end-to-end HBM overhead.
    both = jnp.concatenate(
        [prediction.astype(dtype), label.astype(dtype)], axis=1)        # (B, 6)
    slab = jnp.pad(both.T, ((0, 0), (0, b_padded - B)))                 # (6, b_padded)
    slab = slab.reshape(6, rows_padded, _LANES)

    # Explicit VMEM budget: double-buffered input tile + f32 accumulator (+ headroom).
    in_tile_bytes = 6 * sub_t * _LANES * itemsize
    acc_bytes = sub_t * _LANES * 4
    vmem_need = 2 * in_tile_bytes + acc_bytes
    vmem_limit = int(min(max(vmem_need + (4 << 20), 8 << 20), 56 << 20))

    in_map = lambda c, i: (0, c * tiles_per_split + i, 0)

    out = pl.pallas_call(
        _foref_loss_kernel,
        out_shape=jax.ShapeDtypeStruct((num_core_splits, 1, 1), jnp.float32),
        grid=(num_core_splits, tiles_per_split),
        in_specs=[pl.BlockSpec((6, sub_t, _LANES), in_map)],
        out_specs=pl.BlockSpec((None, 1, 1), lambda c, i: (c, 0, 0)),
        scratch_shapes=[pltpu.VMEM((sub_t, _LANES), jnp.float32)],
        compiler_params=pltpu.CompilerParams(
            dimension_semantics=("parallel", "arbitrary"),
            vmem_limit_bytes=vmem_limit),
    )(slab)

    # Combine the (<= 2-element) per-core partials.
    return jnp.sum(out)


def _foref_loss_ref(prediction, label):
    """Pure-JAX reference of the PyTorch forward (for correctness check)."""
    prediction = prediction.astype(jnp.float32)
    label = label.astype(jnp.float32)
    pa = prediction[:, 2] * ANGLE_RESCALE_SCALE + ANGLE_RESCALE_SHIFT
    la = label[:, 2] * ANGLE_RESCALE_SCALE + ANGLE_RESCALE_SHIFT
    d = jnp.abs(pa - la) % _TWO_PI
    d = jnp.where(d > _PI, _TWO_PI - d, d)
    angle_term = (d / _PI)[:, None]
    pred_vec = jnp.concatenate([prediction[:, :2], angle_term], axis=1)
    label_vec = jnp.concatenate([label[:, :2], jnp.zeros_like(angle_term)], axis=1)
    return jnp.sum((pred_vec - label_vec) ** 2)


if __name__ == "__main__":
    key = jax.random.PRNGKey(0)
    k1, k2, k3, k4, k5, k6 = jax.random.split(key, 6)

    # Small case matching the module's (B, 3) input.
    B1 = 8
    p1 = jax.random.uniform(k1, (B1, 3), jnp.float32, minval=-1.0, maxval=1.0)
    l1 = jax.random.uniform(k2, (B1, 3), jnp.float32, minval=-1.0, maxval=1.0)
    loss1 = foref_loss(p1, l1)
    jax.block_until_ready(loss1)
    np.testing.assert_allclose(np.asarray(loss1), np.asarray(_foref_loss_ref(p1, l1)),
                               rtol=1e-4, atol=1e-4)

    # Larger ragged case: small tile forces multiple grid steps, explicit 2-way core
    # split exercises both partial-sum outputs and batch padding.
    B2 = 5000
    p2 = jax.random.uniform(k3, (B2, 3), jnp.float32, minval=-1.0, maxval=1.0)
    l2 = jax.random.uniform(k4, (B2, 3), jnp.float32, minval=-1.0, maxval=1.0)
    loss2 = foref_loss(p2, l2, block_sublanes=8, num_core_splits=2)
    jax.block_until_ready(loss2)
    np.testing.assert_allclose(np.asarray(loss2), np.asarray(_foref_loss_ref(p2, l2)),
                               rtol=1e-4, atol=1e-4)

    # bf16 inputs: native-dtype DMA + in-kernel f32 upcast, 16-aligned sublane tiles.
    B3 = 3000
    p3 = jax.random.uniform(k5, (B3, 3), jnp.float32, minval=-1.0, maxval=1.0).astype(jnp.bfloat16)
    l3 = jax.random.uniform(k6, (B3, 3), jnp.float32, minval=-1.0, maxval=1.0).astype(jnp.bfloat16)
    loss3 = foref_loss(p3, l3)
    jax.block_until_ready(loss3)
    np.testing.assert_allclose(np.asarray(loss3), np.asarray(_foref_loss_ref(p3, l3)),
                               rtol=1e-3, atol=1e-3)

    print("KERNEL_OK")
</pallas_src>

<mosaic_0001>
module attributes {stable_mosaic.version = 11 : i64} {
  func.func @_foref_loss_kernel(%arg0: i32, %arg1: i32, %arg2: memref<6x8x128xf32, #tpu.memory_space<vmem>>, %arg3: memref<1x1x1xf32, #tpu.memory_space<vmem>>, %arg4: memref<8x128xf32, #tpu.memory_space<vmem>>) attributes {dimension_semantics = [#tpu.dimension_semantics<parallel>, #tpu.dimension_semantics<arbitrary>], iteration_bounds = array<i64: 1, 1>, scalar_prefetch = 0 : i64, scratch_operands = 1 : i64, tpu.core_type = #tpu.core_type<tc>, window_params = [{transform_indices = @transform_0, window_bounds = array<i64: 6, 8, 128>}, {transform_indices = @transform_1, window_bounds = array<i64: 1, 1, 1>}]} {
    %c0_i32 = arith.constant 0 : i32
    %0 = arith.cmpi eq, %arg1, %c0_i32 : i32
    %1 = arith.extui %0 : i1 to i32
    %c0_i32_0 = arith.constant 0 : i32
    %2 = arith.cmpi ne, %1, %c0_i32_0 : i32
    scf.if %2 {
      %cst_21 = arith.constant 0.000000e+00 : f32
      %39 = vector.broadcast %cst_21 : f32 to vector<8x128xf32>
      %c0_22 = arith.constant 0 : index
      %c0_23 = arith.constant 0 : index
      %40 = vector.load %arg4[%c0_22, %c0_23] : memref<8x128xf32, #tpu.memory_space<vmem>>, vector<8x128xf32>
      tpu.vector_store %arg4[%c0_22, %c0_23], %39 {strides = array<i32>} : memref<8x128xf32, #tpu.memory_space<vmem>>, vector<8x128xf32>,
    } else {
    }
    %c0 = arith.constant 0 : index
    %c0_1 = arith.constant 0 : index
    %c0_2 = arith.constant 0 : index
    %3 = vector.load %arg2[%c0, %c0_1, %c0_2] : memref<6x8x128xf32, #tpu.memory_space<vmem>>, vector<1x8x128xf32>
    %4 = vector.shape_cast %3 : vector<1x8x128xf32> to vector<8x128xf32>
    %c1 = arith.constant 1 : index
    %c0_3 = arith.constant 0 : index
    %c0_4 = arith.constant 0 : index
    %5 = vector.load %arg2[%c1, %c0_3, %c0_4] : memref<6x8x128xf32, #tpu.memory_space<vmem>>, vector<1x8x128xf32>
    %6 = vector.shape_cast %5 : vector<1x8x128xf32> to vector<8x128xf32>
    %c2 = arith.constant 2 : index
    %c0_5 = arith.constant 0 : index
    %c0_6 = arith.constant 0 : index
    %7 = vector.load %arg2[%c2, %c0_5, %c0_6] : memref<6x8x128xf32, #tpu.memory_space<vmem>>, vector<1x8x128xf32>
    %8 = vector.shape_cast %7 : vector<1x8x128xf32> to vector<8x128xf32>
    %c3 = arith.constant 3 : index
    %c0_7 = arith.constant 0 : index
    %c0_8 = arith.constant 0 : index
    %9 = vector.load %arg2[%c3, %c0_7, %c0_8] : memref<6x8x128xf32, #tpu.memory_space<vmem>>, vector<1x8x128xf32>
    %10 = vector.shape_cast %9 : vector<1x8x128xf32> to vector<8x128xf32>
    %c4 = arith.constant 4 : index
    %c0_9 = arith.constant 0 : index
    %c0_10 = arith.constant 0 : index
    %11 = vector.load %arg2[%c4, %c0_9, %c0_10] : memref<6x8x128xf32, #tpu.memory_space<vmem>>, vector<1x8x128xf32>
    %12 = vector.shape_cast %11 : vector<1x8x128xf32> to vector<8x128xf32>
    %c5 = arith.constant 5 : index
    %c0_11 = arith.constant 0 : index
    %c0_12 = arith.constant 0 : index
    %13 = vector.load %arg2[%c5, %c0_11, %c0_12] : memref<6x8x128xf32, #tpu.memory_space<vmem>>, vector<1x8x128xf32>
    %14 = vector.shape_cast %13 : vector<1x8x128xf32> to vector<8x128xf32>
    %15 = arith.subf %4, %10 : vector<8x128xf32>
    %16 = arith.subf %6, %12 : vector<8x128xf32>
    %17 = arith.subf %8, %14 : vector<8x128xf32>
    %18 = math.absf %17 : vector<8x128xf32>
    %cst = arith.constant 1.000000e+00 : f32
    %19 = vector.broadcast %cst : f32 to vector<8x128xf32>
    %20 = arith.mulf %18, %19 : vector<8x128xf32>
    %21 = math.floor %20 : vector<8x128xf32>
    %22 = arith.subf %20, %21 : vector<8x128xf32>
    %cst_13 = arith.constant 1.000000e+00 : f32
    %23 = vector.broadcast %cst_13 : f32 to vector<8x128xf32>
    %24 = arith.subf %23, %22 : vector<8x128xf32>
    %25 = arith.minimumf %22, %24 : vector<8x128xf32>
    %cst_14 = arith.constant 2.000000e+00 : f32
    %26 = vector.broadcast %cst_14 : f32 to vector<8x128xf32>
    %27 = arith.mulf %26, %25 : vector<8x128xf32>
    %c0_15 = arith.constant 0 : index
    %c0_16 = arith.constant 0 : index
    %28 = vector.load %arg4[%c0_15, %c0_16] : memref<8x128xf32, #tpu.memory_space<vmem>>, vector<8x128xf32>
    %29 = arith.mulf %15, %15 : vector<8x128xf32>
    %30 = arith.mulf %16, %16 : vector<8x128xf32>
    %31 = arith.addf %29, %30 : vector<8x128xf32>
    %32 = arith.mulf %27, %27 : vector<8x128xf32>
    %33 = arith.addf %31, %32 : vector<8x128xf32>
    %34 = arith.addf %28, %33 : vector<8x128xf32>
    %c0_17 = arith.constant 0 : index
    %c0_18 = arith.constant 0 : index
    %35 = vector.load %arg4[%c0_17, %c0_18] : memref<8x128xf32, #tpu.memory_space<vmem>>, vector<8x128xf32>
    tpu.vector_store %arg4[%c0_17, %c0_18], %34 {strides = array<i32>} : memref<8x128xf32, #tpu.memory_space<vmem>>, vector<8x128xf32>,
    %c0_i32_19 = arith.constant 0 : i32
    %36 = arith.cmpi eq, %arg1, %c0_i32_19 : i32
    %37 = arith.extui %36 : i1 to i32
    %c0_i32_20 = arith.constant 0 : i32
    %38 = arith.cmpi ne, %37, %c0_i32_20 : i32
    scf.if %38 {
      %c0_21 = arith.constant 0 : index
      %c0_22 = arith.constant 0 : index
      %39 = vector.load %arg4[%c0_21, %c0_22] : memref<8x128xf32, #tpu.memory_space<vmem>>, vector<8x128xf32>
      %40 = vector.shape_cast %39 : vector<8x128xf32> to vector<1x8x128xf32>
      %cst_23 = arith.constant dense<0.000000e+00> : vector<8x128xf32>
      %41 = vector.multi_reduction <add>, %40, %cst_23 [0] : vector<1x8x128xf32> to vector<8x128xf32>
      %42 = vector.shape_cast %41 : vector<8x128xf32> to vector<1x8x128xf32>
      %cst_24 = arith.constant dense<0.000000e+00> : vector<1xf32>
      %43 = vector.multi_reduction <add>, %42, %cst_24 [1, 2] : vector<1x8x128xf32> to vector<1xf32>
      %44 = vector.shape_cast %43 : vector<1xf32> to vector<1x1x1xf32>
      %45 = vector.extract %44[0, 0, 0] : f32 from vector<1x1x1xf32>
      %46 = vector.broadcast %45 : f32 to vector<1x1xf32>
      %c0_25 = arith.constant 0 : index
      %c0_26 = arith.constant 0 : index
      %c0_27 = arith.constant 0 : index
      %47 = vector.load %arg3[%c0_25, %c0_26, %c0_27] : memref<1x1x1xf32, #tpu.memory_space<vmem>>, vector<1x1x1xf32>
      %48 = vector.shape_cast %47 : vector<1x1x1xf32> to vector<1x1xf32>
      %49 = vector.shape_cast %46 : vector<1x1xf32> to vector<1x1x1xf32>
      tpu.vector_store %arg3[%c0_25, %c0_26, %c0_27], %49 {strides = array<i32>} : memref<1x1x1xf32, #tpu.memory_space<vmem>>, vector<1x1x1xf32>,
    } else {
    }
    return
  }
  func.func @transform_0(%arg0: i32, %arg1: i32) -> (i32, i32, i32) {
    %c1_i32 = arith.constant 1 : i32
    %0 = arith.muli %arg0, %c1_i32 : i32
    %1 = arith.addi %0, %arg1 : i32
    %c0_i32 = arith.constant 0 : i32
    %c0_i32_0 = arith.constant 0 : i32
    %c0_i32_1 = arith.constant 0 : i32
    return %c0_i32, %1, %c0_i32_0 : i32, i32, i32
  }
  func.func @transform_1(%arg0: i32, %arg1: i32) -> (i32, i32, i32) {
    %c0_i32 = arith.constant 0 : i32
    %c0_i32_0 = arith.constant 0 : i32
    %c0_i32_1 = arith.constant 0 : i32
    return %arg0, %c0_i32, %c0_i32_0 : i32, i32, i32
  }
}

</mosaic_0001>

<llo_original>
// kernel: tpu_custom_call.1
$region0: #{tpu_custom_call.1}
  #allocation0 [shape = 'u32[]', space=smem, size = 0x4, offset = 0x4, fixed_abs, tag = 'smem constant byte address 0x4 - core index']
  #allocation1 [shape = 'u32[72,128]{1,0:T(1,128)}', space=vmem, size = 0x9000, scoped, tag = 'internal scratch']
  #allocation2 [shape = 'f32[8,128]{1,0:T(8,128)}', space=vmem, size = 0x1000, scoped, tag = 'scratch operand']
  %s0 = inlined_call_operand.hbm [shape: f32[6,8,128], index: 0, kind: input, shape index: {}]
  %s1 = inlined_call_operand.hbm [shape: f32[1,1,1], index: 1, kind: output, shape index: {}]
  %s2 = sld [smem:[#allocation0]]
  $region26: #{tpu_custom_call.1} parent=0
    _
  %s4 = ssub.s32 1, %s2
  %s5 = scalar_select 0, %s4, %s2
  $region1: #{tpu_custom_call.1} parent=0
    #allocation3 [shape = 'u8[24576]{0}', space=vmem, size = 0x6000, scoped, tag = 'input window, operand 0, single buffered']
    #allocation4 [shape = 's32[1]{0}', space=sflag, size = 0x4, scoped, tag = 'scoped memory for tpu_custom_call.1']
    #allocation5 [shape = 's32[1]{0}', space=sflag, size = 0x4, scoped, tag = 'scoped memory for tpu_custom_call.1']
    #allocation6 [shape = 'u8[512]{0}', space=vmem, size = 0x400, scoped, tag = 'output window, operand 0, single buffered']
    %6 = vsyncpa [#allocation4], 0
    %7 = vsyncpa [#allocation5], 0
    // Predicated region
    $region2: #{tpu_custom_call.1} parent=1 // pred_check
      _
    $region3: #{tpu_custom_call.1} parent=1 // pred_check_branch
      %9 = sbr.rel (0) target = $region5
    $region4: #{tpu_custom_call.1} parent=1 // pred_region
      %s10 = sadd.s32 0, 0
      %12 = vsyncadd [#allocation4], 0
      %s13 = smul.addr %s10, 8
      %s14 = scalar_lea.hbm %s0, %s13
      %s15 = sshll.u32 %s14, 4
      %s16 = int_to_ptr.hbm [resolvable:$true] %s15
      %s17 = sshll.u32 [#allocation3], 4
      %s18 = int_to_ptr.vmem [resolvable:$true] %s17
      %23 = dma.hbm_to_vmem [thread:$0]  %s16, 768, %s18, [#allocation4], 128, 128, 8
    $region5: #{tpu_custom_call.1} parent=1 // pred_fallthru
      _
    // Predicated region
    $region6: #{tpu_custom_call.1} parent=1 // pred_check
      _
    $region7: #{tpu_custom_call.1} parent=1 // pred_check_branch
      %25 = sbr.rel (0) target = $region9
    $region8: #{tpu_custom_call.1} parent=1 // pred_region
      %27 = dma.done [#allocation4], 768
    $region9: #{tpu_custom_call.1} parent=1 // pred_fallthru
      _
    %s28 = sadd.s32 0, 0
    %p29 = scmp.eq.s32.totalorder 0, 0
    // Predicated region
    $region10: #{tpu_custom_call.1} parent=1 // pred_check
      %p30 = pneg %p29
    $region11: #{tpu_custom_call.1} parent=1 // pred_check_branch
      %32 = sbr.rel (%p30) target = $region13
    $region12: #{tpu_custom_call.1} parent=1 // pred_region
      %33 = vst [vmem:[#allocation2] sm:$0xff] 0.0
    $region13: #{tpu_custom_call.1} parent=1 // pred_fallthru
      _
    %v34 = vld [vmem:[#allocation3] sm:$0xff]
    %s35 = scalar_lea.vmem [#allocation3], 8
    %v36 = vld [vmem:[%s35] sm:$0xff]
    %s37 = scalar_lea.vmem [#allocation3], 16
    %v38 = vld [vmem:[%s37] sm:$0xff]
    %s39 = scalar_lea.vmem [#allocation3], 24
    %v40 = vld [vmem:[%s39] sm:$0xff]
    %s41 = scalar_lea.vmem [#allocation3], 32
    %v42 = vld [vmem:[%s41] sm:$0xff]
    %s43 = scalar_lea.vmem [#allocation3], 40
    %v44 = vld [vmem:[%s43] sm:$0xff]
    %v45 = vsub.f32 %v34, %v40
    %v46 = vsub.f32 %v36, %v42
    %v47 = vsub.f32 %v38, %v44
    %v48 = vand.u32 2147483647, %v47
    %v49 = vfloor.f32 %v48
    %v50 = vsub.f32 %v48, %v49
    %v51 = vsub.f32 1.0, %v50
    %v52 = vmin.f32 %v50, %v51
    %v53 = vmul.f32 %v52, 2.0
    %v54 = vld [vmem:[#allocation2] sm:$0xff]
    %v55 = vmul.f32 %v45, %v45
    %v56 = vmul.f32 %v46, %v46
    %v57 = vadd.f32 %v55, %v56
    %v58 = vmul.f32 %v53, %v53
    %v59 = vadd.f32 %v57, %v58
    %v60 = vadd.f32 %v54, %v59
    %61 = vst [vmem:[#allocation2] sm:$0xff] %v60
    // Predicated region
    $region14: #{tpu_custom_call.1} parent=1 // pred_check
      %p62 = pneg %p29
    $region15: #{tpu_custom_call.1} parent=1 // pred_check_branch
      %64 = sbr.rel (%p62) target = $region17
    $region16: #{tpu_custom_call.1} parent=1 // pred_region
      %v65 = vld [vmem:[#allocation2] sm:$0xff]
      %v66 = vadd.f32 %v65, 0.0
      %67 = vadd.xlane.f32.xlu0 %v66
      %v68 = vpop.xlane.xlu0 %67
      %v69 = vrot.slane %v68, 4
      %v70 = vadd.f32 %v68, %v69
      %v71 = vrot.slane %v70, 2
      %v72 = vadd.f32 %v70, %v71
      %v73 = vrot.slane %v72, 1
      %v74 = vadd.f32 %v72, %v73
      %s75 = vtos %v74
      %v76 = vstv %s75
      %vm77 = vcmask 0
      %78 = vst.msk [vmem:[#allocation6] sm:$0x1] %vm77, %v76
    $region17: #{tpu_custom_call.1} parent=1 // pred_fallthru
      _
    // Predicated region
    $region18: #{tpu_custom_call.1} parent=1 // pred_check
      _
    $region19: #{tpu_custom_call.1} parent=1 // pred_check_branch
      %80 = sbr.rel (0) target = $region21
    $region20: #{tpu_custom_call.1} parent=1 // pred_region
      %82 = vsyncadd [#allocation5], 0
      %s84 = sshll.u32 [#allocation6], 4
      %s85 = int_to_ptr.vmem [resolvable:$true] %s84
      %s86 = sshll.u32 %s1, 4
      %s87 = int_to_ptr.hbm [resolvable:$true] %s86
      %89 = dma.vmem_to_hbm [thread:$0]  %s85, 16, %s87, [#allocation5]
    $region21: #{tpu_custom_call.1} parent=1 // pred_fallthru
      _
    // Predicated region
    $region22: #{tpu_custom_call.1} parent=1 // pred_check
      _
    $region23: #{tpu_custom_call.1} parent=1 // pred_check_branch
      %91 = sbr.rel (0) target = $region25
    $region24: #{tpu_custom_call.1} parent=1 // pred_region
      %93 = dma.done [#allocation5], 16
    $region25: #{tpu_custom_call.1} parent=1 // pred_fallthru
      _
    %94 = vsyncpa [#allocation4], 1
    %95 = vsyncpa [#allocation5], 1

</llo_original>
